<compile_context>
chip_gen: v7x
topology: tpu7x:2x2x1
jax: 0.10.0
libtpu: 0.0.40
codegen_flags: <defaults>
</compile_context>

<pallas_src>
import jax
import jax.numpy as jnp
import numpy as np
from jax import lax
from jax.experimental import pallas as pl
from jax.experimental.pallas import tpu as pltpu


def _round_up(x, m):
    return ((x + m - 1) // m) * m


def _vmem_capacity_bytes():
    try:
        info = pltpu.get_tpu_info()
        cap = getattr(info, "vmem_capacity_bytes", None)
        if cap:
            return int(cap)
    except Exception:
        pass
    return 64 << 20  # conservative default = v7x per-TensorCore VMEM


def _query_tiling(nh_r, nl_r, vmem_cap):
    """Pick (tq, nh_r_padded): tq is a multiple of 128 that divides the padded axis."""
    # (tq, nl_r) f32 attention temp budget: smaller on 64 MiB parts, larger on 128 MiB.
    budget = (2 << 20) if vmem_cap <= (64 << 20) else (12 << 20)
    full = _round_up(nh_r, 128)
    if full * nl_r * 4 <= budget:
        return full, full
    tq = max(128, (budget // (nl_r * 4)) // 128 * 128)
    tq = min(tq, full)
    return tq, _round_up(nh_r, tq)


# ------------------------------------------------------------------ kernel ---
def _make_pnl_kernel(r, c_rp, nh_r_p, nl_r, tq):
    f32, bf16 = jnp.float32, jnp.bfloat16
    mk_kn = (((1,), (0,)), ((), ()))   # (M,K) x (K,N) -> (M,N)
    c00 = (((0,), (0,)), ((), ()))     # contract dim 0 of both operands
    c11 = (((1,), (1,)), ((), ()))     # contract dim 1 of both operands

    def kernel(xh_ref, xl_ref, wth_ref, bth_ref, wgp_ref, bgp_ref,
               wW_ref, bW_ref, out_ref, th_c, g_c, phi_c, yw_c):
        q = pl.program_id(1)

        # ---- once per batch: the three 1x1 convs as single wide MXU matmuls,
        #      cached in VMEM with the channel-stacked `.view` piece layout. ------
        @pl.when(q == 0)
        def _():
            xl_bf = xl_ref[0].astype(bf16)                           # (C_l, N_l)
            gp = lax.dot_general(wgp_ref[...], xl_bf, mk_kn,
                                 preferred_element_type=f32) + bgp_ref[...]
            gp = gp.astype(bf16)                                     # (2*c_rp, N_l)
            xh_bf = xh_ref[0].astype(bf16)                           # (C_h, r*nh_r_p)
            th = lax.dot_general(wth_ref[...], xh_bf, mk_kn,
                                 preferred_element_type=f32) + bth_ref[...]
            th = th.astype(bf16)                                     # (c_rp, r*nh_r_p)
            for i in range(r):                                       # small static loop
                g_c[i * c_rp:(i + 1) * c_rp, :] = gp[:c_rp, i * nl_r:(i + 1) * nl_r]
                phi_c[i * c_rp:(i + 1) * c_rp, :] = gp[c_rp:, i * nl_r:(i + 1) * nl_r]
                th_c[i * c_rp:(i + 1) * c_rp, :] = th[:, i * nh_r_p:(i + 1) * nh_r_p]

        # ---- per query tile -----------------------------------------------------
        qoff = pl.multiple_of(q * tq, 128)
        th_s = th_c[:, pl.ds(qoff, tq)]                              # (r*c_rp, tq) bf16
        # attention = energy / energy.size(-1); the 1/size factor is folded into theta.
        attn = lax.dot_general(th_s, phi_c[...], c00,
                               preferred_element_type=f32)           # (tq, nl_r) f32
        y = lax.dot_general(g_c[...], attn.astype(bf16), c11,
                            preferred_element_type=f32)              # (r*c_rp, tq) f32
        y_bf = y.astype(bf16)
        # lay the r y-pieces side by side -> one wide W matmul
        for i in range(r):
            yw_c[:, i * tq:(i + 1) * tq] = y_bf[i * c_rp:(i + 1) * c_rp, :]
        wy = lax.dot_general(wW_ref[...], yw_c[...], mk_kn,
                             preferred_element_type=f32) + bW_ref[...]   # (C_h, r*tq)
        for i in range(r):
            col = i * nh_r_p + qoff
            out_ref[0, :, pl.ds(col, tq)] = (wy[:, i * tq:(i + 1) * tq]
                                             + xh_ref[0, :, pl.ds(col, tq)])

    return kernel


# ----------------------------------------------------------------- wrapper ---
def pnl_forward(x_h, x_l, params, reduc_ratio=2):
    """x_h: (B, high_dim, H_h, W_h), x_l: (B, low_dim, H_l, W_l)  (NCHW, f32)."""
    f32, bf16 = jnp.float32, jnp.bfloat16
    B, C_h, H_h, W_h = x_h.shape
    _, C_l, H_l, W_l = x_l.shape
    r = reduc_ratio
    N_h, N_l = H_h * W_h, H_l * W_l
    assert N_h % r == 0 and N_l % r == 0, "torch .view needs spatial % reduc_ratio == 0"
    assert C_l % r == 0
    C_r = C_l // r
    nh_r, nl_r = N_h // r, N_l // r

    vmem_cap = _vmem_capacity_bytes()
    tq, nh_r_p = _query_tiling(nh_r, nl_r, vmem_cap)
    n_q = nh_r_p // tq
    w_tot = r * nh_r_p
    c_rp = _round_up(C_r, 16)          # channel padding with zero rows: exact no-op

    # --- fold BatchNorm (eval running stats) into the W conv (fold in f32) -------
    eps = 1e-5
    scale = params["bn_gamma"] / jnp.sqrt(params["bn_var"] + eps)            # (C_h,)
    shift = params["bn_beta"] - params["bn_mean"] * scale
    w_W_p = jnp.pad(params["w_W"] * scale[:, None],
                    ((0, 0), (0, c_rp - C_r))).astype(bf16)                  # (C_h, c_rp)
    b_W_eff = (params["b_W"] * scale + shift).reshape(C_h, 1).astype(f32)

    # --- fold the 1/energy.size(-1) scale into theta; pad C_r with zero rows -----
    inv_cols = 1.0 / nl_r

    def pad_rows(a):
        return jnp.pad(a, ((0, c_rp - C_r),) + ((0, 0),) * (a.ndim - 1))

    w_th_p = pad_rows(params["w_theta"] * inv_cols).astype(bf16)             # (c_rp, C_h)
    b_th_p = pad_rows((params["b_theta"] * inv_cols).reshape(C_r, 1)).astype(f32)

    # --- stack g|phi so the x_l conv is one (2*c_rp, C_l) matmul -----------------
    w_gp = jnp.concatenate([pad_rows(params["w_g"]),
                            pad_rows(params["w_phi"])], axis=0).astype(bf16)
    b_gp = jnp.concatenate([pad_rows(params["b_g"].reshape(C_r, 1)),
                            pad_rows(params["b_phi"].reshape(C_r, 1))],
                           axis=0).astype(f32)                               # (2*c_rp, 1)

    # --- natural layouts; only the per-piece query axis gets zero-padded ---------
    xh4 = x_h.astype(f32).reshape(B, C_h, r, nh_r)
    if nh_r_p != nh_r:
        xh4 = jnp.pad(xh4, ((0, 0), (0, 0), (0, 0), (0, nh_r_p - nh_r)))
    xh_in = xh4.reshape(B, C_h, w_tot)
    xl_in = x_l.astype(f32).reshape(B, C_l, N_l)

    # --- advisory cost estimate ---------------------------------------------------
    macs = (2 * c_rp * C_l * N_l            # g + phi conv
            + c_rp * C_h * w_tot            # theta conv
            + 2 * r * c_rp * nh_r_p * nl_r  # energy + y
            + C_h * c_rp * w_tot)           # W conv
    flops = 2 * B * macs
    bytes_accessed = (xh_in.size * 4 + xl_in.size * 4 + B * C_h * w_tot * 4
                      + (w_gp.size + w_th_p.size + w_W_p.size) * 2
                      + (b_gp.size + b_th_p.size + b_W_eff.size) * 4)

    # --- generation-aware VMEM budget ---------------------------------------------
    blk = 2 * C_h * w_tot * 4 + C_l * N_l * 4                        # x_h + out + x_l blocks
    wgt = ((w_gp.size + w_th_p.size + w_W_p.size) * 2
           + (b_gp.size + b_th_p.size + b_W_eff.size) * 4)
    cache = r * c_rp * (nh_r_p + 2 * nl_r) * 2 + c_rp * r * tq * 2
    tile_tmp = tq * nl_r * 6 + r * c_rp * tq * 6 + C_h * r * tq * 8
    init_tmp = (C_l * N_l * 2 + 2 * c_rp * N_l * 6
                + C_h * w_tot * 2 + c_rp * w_tot * 6)
    est = 2 * (blk + wgt) + cache + max(tile_tmp, init_tmp)
    vmem_limit = int(min(int(0.9 * vmem_cap), max(32 << 20, int(1.4 * est))))

    def wspec(shape):
        return pl.BlockSpec(shape, lambda b, q, _s=shape: tuple(0 for _ in _s))

    kernel = _make_pnl_kernel(r, c_rp, nh_r_p, nl_r, tq)

    out_arr = pl.pallas_call(
        kernel,
        out_shape=jax.ShapeDtypeStruct((B, C_h, w_tot), f32),
        grid=(B, n_q),
        in_specs=[
            pl.BlockSpec((1, C_h, w_tot), lambda b, q: (b, 0, 0)),   # x_h (natural layout)
            pl.BlockSpec((1, C_l, N_l), lambda b, q: (b, 0, 0)),     # x_l (natural layout)
            wspec(w_th_p.shape), wspec(b_th_p.shape),                # theta (scaled, padded)
            wspec(w_gp.shape), wspec(b_gp.shape),                    # g | phi stacked
            wspec(w_W_p.shape), wspec(b_W_eff.shape),                # W (BN folded)
        ],
        out_specs=pl.BlockSpec((1, C_h, w_tot), lambda b, q: (b, 0, 0)),
        scratch_shapes=[
            pltpu.VMEM((r * c_rp, nh_r_p), bf16),    # theta cache (piece-stacked)
            pltpu.VMEM((r * c_rp, nl_r), bf16),      # g cache
            pltpu.VMEM((r * c_rp, nl_r), bf16),      # phi cache
            pltpu.VMEM((c_rp, r * tq), bf16),        # y pieces laid side by side
        ],
        compiler_params=pltpu.CompilerParams(
            dimension_semantics=("parallel", "arbitrary"),
            vmem_limit_bytes=vmem_limit),
        cost_estimate=pl.CostEstimate(flops=flops, transcendentals=0,
                                      bytes_accessed=bytes_accessed),
    )(xh_in, xl_in, w_th_p, b_th_p, w_gp, b_gp, w_W_p, b_W_eff)

    out4 = out_arr.reshape(B, C_h, r, nh_r_p)
    if nh_r_p != nh_r:
        out4 = out4[:, :, :, :nh_r]
    return out4.reshape(B, C_h, H_h, W_h)


# ------------------------------------------------------- pure-JAX reference ---
def pnl_reference(x_h, x_l, params):
    """Literal f32 translation of the PyTorch forward (for checking)."""
    B, C_h, H_h, W_h = x_h.shape
    _, C_l, _, _ = x_l.shape
    low_dim = C_l
    reduc = low_dim // params["w_g"].shape[0]

    def conv1x1(x, w, b):
        return jnp.einsum("oc,bchw->bohw", w, x) + b[None, :, None, None]

    g_x = conv1x1(x_l, params["w_g"], params["b_g"]).reshape(B, low_dim, -1)
    g_x = jnp.transpose(g_x, (0, 2, 1))
    theta_x = conv1x1(x_h, params["w_theta"], params["b_theta"]).reshape(B, low_dim, -1)
    theta_x = jnp.transpose(theta_x, (0, 2, 1))
    phi_x = conv1x1(x_l, params["w_phi"], params["b_phi"]).reshape(B, low_dim, -1)
    energy = jnp.matmul(theta_x, phi_x)
    attention = energy / energy.shape[-1]
    y = jnp.matmul(attention, g_x)
    y = jnp.transpose(y, (0, 2, 1)).reshape(B, low_dim // reduc, H_h, W_h)
    W_y = conv1x1(y, params["w_W"], params["b_W"])
    eps = 1e-5
    scale = params["bn_gamma"] / jnp.sqrt(params["bn_var"] + eps)
    shift = params["bn_beta"] - params["bn_mean"] * scale
    W_y = W_y * scale[None, :, None, None] + shift[None, :, None, None]
    return W_y + x_h


# -------------------------------------------------------------------- main ---
def init_params(key, high_dim, low_dim, reduc_ratio=2, torch_bn_init=True):
    C_r = low_dim // reduc_ratio
    ks = jax.random.split(key, 12)
    p = {
        "w_g":     0.1 * jax.random.normal(ks[0], (C_r, low_dim), jnp.float32),
        "b_g":     0.05 * jax.random.normal(ks[1], (C_r,), jnp.float32),
        "w_theta": 0.1 * jax.random.normal(ks[2], (C_r, high_dim), jnp.float32),
        "b_theta": 0.05 * jax.random.normal(ks[3], (C_r,), jnp.float32),
        "w_phi":   0.1 * jax.random.normal(ks[4], (C_r, low_dim), jnp.float32),
        "b_phi":   0.05 * jax.random.normal(ks[5], (C_r,), jnp.float32),
        "w_W":     0.1 * jax.random.normal(ks[6], (high_dim, C_r), jnp.float32),
        "b_W":     0.05 * jax.random.normal(ks[7], (high_dim,), jnp.float32),
    }
    if torch_bn_init:
        # Matches the module __init__ (gamma=beta=0) -> output collapses to x_h.
        p.update({"bn_gamma": jnp.zeros((high_dim,), jnp.float32),
                  "bn_beta":  jnp.zeros((high_dim,), jnp.float32),
                  "bn_mean":  jnp.zeros((high_dim,), jnp.float32),
                  "bn_var":   jnp.ones((high_dim,), jnp.float32)})
    else:
        # "Trained" eval-mode BN so the attention path actually contributes.
        p.update({"bn_gamma": 0.5 + jax.random.uniform(ks[8], (high_dim,), jnp.float32),
                  "bn_beta":  0.1 * jax.random.normal(ks[9], (high_dim,), jnp.float32),
                  "bn_mean":  0.1 * jax.random.normal(ks[10], (high_dim,), jnp.float32),
                  "bn_var":   0.5 + jax.random.uniform(ks[11], (high_dim,), jnp.float32)})
    return p


if __name__ == "__main__":
    B = 2
    high_dim = 8
    low_dim = 8
    reduc_ratio = 2
    H_h = W_h = 8     # x_h spatial
    H_l = W_l = 8     # x_l spatial

    key = jax.random.PRNGKey(0)
    k_xh, k_xl, k_p = jax.random.split(key, 3)
    x_h = jax.random.normal(k_xh, (B, high_dim, H_h, W_h), jnp.float32)
    x_l = jax.random.normal(k_xl, (B, low_dim, H_l, W_l), jnp.float32)
    # Non-zero BN stats so the non-local path is exercised (the module's own
    # init zeros gamma/beta, which would make z == x_h and hide bugs).
    params = init_params(k_p, high_dim, low_dim, reduc_ratio, torch_bn_init=False)

    fwd = jax.jit(pnl_forward)
    z = jax.block_until_ready(fwd(x_h, x_l, params))

    z_ref = pnl_reference(x_h, x_l, params)
    assert z.shape == x_h.shape and z.dtype == x_h.dtype
    # bf16 matmul operands with f32 accumulation vs. a pure-f32 reference.
    np.testing.assert_allclose(np.asarray(z), np.asarray(z_ref),
                               rtol=2e-3, atol=2e-3)
    print("KERNEL_OK")
</pallas_src>

<mosaic_0001>
module attributes {stable_mosaic.version = 11 : i64} {
  func.func @kernel(%arg0: i32, %arg1: i32, %arg2: memref<1x8x256xf32, #tpu.memory_space<vmem>>, %arg3: memref<1x8x64xf32, #tpu.memory_space<vmem>>, %arg4: memref<16x8xbf16, #tpu.memory_space<vmem>>, %arg5: memref<16x1xf32, #tpu.memory_space<vmem>>, %arg6: memref<32x8xbf16, #tpu.memory_space<vmem>>, %arg7: memref<32x1xf32, #tpu.memory_space<vmem>>, %arg8: memref<8x16xbf16, #tpu.memory_space<vmem>>, %arg9: memref<8x1xf32, #tpu.memory_space<vmem>>, %arg10: memref<1x8x256xf32, #tpu.memory_space<vmem>>, %arg11: memref<32x128xbf16, #tpu.memory_space<vmem>>, %arg12: memref<32x32xbf16, #tpu.memory_space<vmem>>, %arg13: memref<32x32xbf16, #tpu.memory_space<vmem>>, %arg14: memref<16x256xbf16, #tpu.memory_space<vmem>>) attributes {dimension_semantics = [#tpu.dimension_semantics<parallel>, #tpu.dimension_semantics<arbitrary>], iteration_bounds = array<i64: 2, 1>, scalar_prefetch = 0 : i64, scratch_operands = 4 : i64, tpu.core_type = #tpu.core_type<tc>, window_params = [{transform_indices = @transform_0, window_bounds = array<i64: 1, 8, 256>}, {transform_indices = @transform_1, window_bounds = array<i64: 1, 8, 64>}, {pipeline_mode = #tpu.pipeline_mode<synchronous>, transform_indices = @transform_2, window_bounds = array<i64: 16, 8>}, {pipeline_mode = #tpu.pipeline_mode<synchronous>, transform_indices = @transform_3, window_bounds = array<i64: 16, 1>}, {pipeline_mode = #tpu.pipeline_mode<synchronous>, transform_indices = @transform_4, window_bounds = array<i64: 32, 8>}, {pipeline_mode = #tpu.pipeline_mode<synchronous>, transform_indices = @transform_5, window_bounds = array<i64: 32, 1>}, {pipeline_mode = #tpu.pipeline_mode<synchronous>, transform_indices = @transform_6, window_bounds = array<i64: 8, 16>}, {pipeline_mode = #tpu.pipeline_mode<synchronous>, transform_indices = @transform_7, window_bounds = array<i64: 8, 1>}, {transform_indices = @transform_8, window_bounds = array<i64: 1, 8, 256>}]} {
    %c0_i32 = arith.constant 0 : i32
    %0 = arith.cmpi eq, %arg1, %c0_i32 : i32
    %1 = arith.extui %0 : i1 to i32
    %c0_i32_0 = arith.constant 0 : i32
    %2 = arith.cmpi ne, %1, %c0_i32_0 : i32
    scf.if %2 {
      %c0_26 = arith.constant 0 : index
      %c0_27 = arith.constant 0 : index
      %c0_28 = arith.constant 0 : index
      %43 = vector.load %arg3[%c0_26, %c0_27, %c0_28] : memref<1x8x64xf32, #tpu.memory_space<vmem>>, vector<1x8x64xf32>
      %44 = vector.shape_cast %43 : vector<1x8x64xf32> to vector<8x64xf32>
      %45 = arith.truncf %44 : vector<8x64xf32> to vector<8x64xbf16>
      %c0_29 = arith.constant 0 : index
      %c0_30 = arith.constant 0 : index
      %46 = vector.load %arg6[%c0_29, %c0_30] : memref<32x8xbf16, #tpu.memory_space<vmem>>, vector<32x8xbf16>
      %cst_31 = arith.constant dense<0.000000e+00> : vector<32x64xf32>
      %47 = tpu.matmul %46, %45, %cst_31 {dimension_numbers = #tpu.dot_dimension_numbers<[1], [0], [0], [1], [0, 0, 1, 1], [], []>} : vector<32x8xbf16>, vector<8x64xbf16>, vector<32x64xf32> -> vector<32x64xf32>
      %c0_32 = arith.constant 0 : index
      %c0_33 = arith.constant 0 : index
      %48 = vector.load %arg7[%c0_32, %c0_33] : memref<32x1xf32, #tpu.memory_space<vmem>>, vector<32x1xf32>
      %49 = vector.broadcast %48 : vector<32x1xf32> to vector<32x64xf32>
      %50 = arith.addf %47, %49 : vector<32x64xf32>
      %51 = arith.truncf %50 : vector<32x64xf32> to vector<32x64xbf16>
      %c0_34 = arith.constant 0 : index
      %c0_35 = arith.constant 0 : index
      %c0_36 = arith.constant 0 : index
      %52 = vector.load %arg2[%c0_34, %c0_35, %c0_36] : memref<1x8x256xf32, #tpu.memory_space<vmem>>, vector<1x8x256xf32>
      %53 = vector.shape_cast %52 : vector<1x8x256xf32> to vector<8x256xf32>
      %54 = arith.truncf %53 : vector<8x256xf32> to vector<8x256xbf16>
      %c0_37 = arith.constant 0 : index
      %c0_38 = arith.constant 0 : index
      %55 = vector.load %arg4[%c0_37, %c0_38] : memref<16x8xbf16, #tpu.memory_space<vmem>>, vector<16x8xbf16>
      %cst_39 = arith.constant dense<0.000000e+00> : vector<16x256xf32>
      %56 = tpu.matmul %55, %54, %cst_39 {dimension_numbers = #tpu.dot_dimension_numbers<[1], [0], [0], [1], [0, 0, 1, 1], [], []>} : vector<16x8xbf16>, vector<8x256xbf16>, vector<16x256xf32> -> vector<16x256xf32>
      %c0_40 = arith.constant 0 : index
      %c0_41 = arith.constant 0 : index
      %57 = vector.load %arg5[%c0_40, %c0_41] : memref<16x1xf32, #tpu.memory_space<vmem>>, vector<16x1xf32>
      %58 = vector.broadcast %57 : vector<16x1xf32> to vector<16x256xf32>
      %59 = arith.addf %56, %58 : vector<16x256xf32>
      %60 = arith.truncf %59 : vector<16x256xf32> to vector<16x256xbf16>
      %61 = vector.extract_strided_slice %51 {offsets = [0, 0], sizes = [16, 32], strides = [1, 1]} : vector<32x64xbf16> to vector<16x32xbf16>
      %c0_42 = arith.constant 0 : index
      %c0_43 = arith.constant 0 : index
      %62 = vector.load %arg12[%c0_42, %c0_43] : memref<32x32xbf16, #tpu.memory_space<vmem>>, vector<16x32xbf16>
      tpu.vector_store %arg12[%c0_42, %c0_43], %61 {strides = array<i32>} : memref<32x32xbf16, #tpu.memory_space<vmem>>, vector<16x32xbf16>,
      %63 = vector.extract_strided_slice %51 {offsets = [16, 0], sizes = [16, 32], strides = [1, 1]} : vector<32x64xbf16> to vector<16x32xbf16>
      %c0_44 = arith.constant 0 : index
      %c0_45 = arith.constant 0 : index
      %64 = vector.load %arg13[%c0_44, %c0_45] : memref<32x32xbf16, #tpu.memory_space<vmem>>, vector<16x32xbf16>
      tpu.vector_store %arg13[%c0_44, %c0_45], %63 {strides = array<i32>} : memref<32x32xbf16, #tpu.memory_space<vmem>>, vector<16x32xbf16>,
      %65 = vector.extract_strided_slice %60 {offsets = [0, 0], sizes = [16, 128], strides = [1, 1]} : vector<16x256xbf16> to vector<16x128xbf16>
      %c0_46 = arith.constant 0 : index
      %c0_47 = arith.constant 0 : index
      %66 = vector.load %arg11[%c0_46, %c0_47] : memref<32x128xbf16, #tpu.memory_space<vmem>>, vector<16x128xbf16>
      tpu.vector_store %arg11[%c0_46, %c0_47], %65 {strides = array<i32>} : memref<32x128xbf16, #tpu.memory_space<vmem>>, vector<16x128xbf16>,
      %67 = vector.extract_strided_slice %51 {offsets = [0, 32], sizes = [16, 32], strides = [1, 1]} : vector<32x64xbf16> to vector<16x32xbf16>
      %c16 = arith.constant 16 : index
      %c0_48 = arith.constant 0 : index
      %68 = vector.load %arg12[%c16, %c0_48] : memref<32x32xbf16, #tpu.memory_space<vmem>>, vector<16x32xbf16>
      tpu.vector_store %arg12[%c16, %c0_48], %67 {strides = array<i32>} : memref<32x32xbf16, #tpu.memory_space<vmem>>, vector<16x32xbf16>,
      %69 = vector.extract_strided_slice %51 {offsets = [16, 32], sizes = [16, 32], strides = [1, 1]} : vector<32x64xbf16> to vector<16x32xbf16>
      %c16_49 = arith.constant 16 : index
      %c0_50 = arith.constant 0 : index
      %70 = vector.load %arg13[%c16_49, %c0_50] : memref<32x32xbf16, #tpu.memory_space<vmem>>, vector<16x32xbf16>
      tpu.vector_store %arg13[%c16_49, %c0_50], %69 {strides = array<i32>} : memref<32x32xbf16, #tpu.memory_space<vmem>>, vector<16x32xbf16>,
      %71 = vector.extract_strided_slice %60 {offsets = [0, 128], sizes = [16, 128], strides = [1, 1]} : vector<16x256xbf16> to vector<16x128xbf16>
      %c16_51 = arith.constant 16 : index
      %c0_52 = arith.constant 0 : index
      %72 = vector.load %arg11[%c16_51, %c0_52] : memref<32x128xbf16, #tpu.memory_space<vmem>>, vector<16x128xbf16>
      tpu.vector_store %arg11[%c16_51, %c0_52], %71 {strides = array<i32>} : memref<32x128xbf16, #tpu.memory_space<vmem>>, vector<16x128xbf16>,
    } else {
    }
    %c128_i32 = arith.constant 128 : i32
    %3 = arith.muli %arg1, %c128_i32 : i32
    %4 = tpu.assume_multiple %3, 128 : i32
    %c0 = arith.constant 0 : index
    %5 = arith.index_cast %4 : i32 to index
    %6 = vector.load %arg11[%c0, %5] : memref<32x128xbf16, #tpu.memory_space<vmem>>, vector<32x128xbf16>
    %c0_1 = arith.constant 0 : index
    %c0_2 = arith.constant 0 : index
    %7 = vector.load %arg13[%c0_1, %c0_2] : memref<32x32xbf16, #tpu.memory_space<vmem>>, vector<32x32xbf16>
    %cst = arith.constant dense<0.000000e+00> : vector<128x32xf32>
    %8 = tpu.matmul %6, %7, %cst {dimension_numbers = #tpu.dot_dimension_numbers<[0], [0], [1], [1], [0, 1, 1, 1], [], []>} : vector<32x128xbf16>, vector<32x32xbf16>, vector<128x32xf32> -> vector<128x32xf32>
    %c0_3 = arith.constant 0 : index
    %c0_4 = arith.constant 0 : index
    %9 = vector.load %arg12[%c0_3, %c0_4] : memref<32x32xbf16, #tpu.memory_space<vmem>>, vector<32x32xbf16>
    %10 = arith.truncf %8 : vector<128x32xf32> to vector<128x32xbf16>
    %cst_5 = arith.constant dense<0.000000e+00> : vector<32x128xf32>
    %11 = tpu.matmul %9, %10, %cst_5 {dimension_numbers = #tpu.dot_dimension_numbers<[1], [1], [0], [0], [0, 0, 1, 0], [], []>} : vector<32x32xbf16>, vector<128x32xbf16>, vector<32x128xf32> -> vector<32x128xf32>
    %12 = arith.truncf %11 : vector<32x128xf32> to vector<32x128xbf16>
    %13 = vector.extract_strided_slice %12 {offsets = [0, 0], sizes = [16, 128], strides = [1, 1]} : vector<32x128xbf16> to vector<16x128xbf16>
    %c0_6 = arith.constant 0 : index
    %c0_7 = arith.constant 0 : index
    %14 = vector.load %arg14[%c0_6, %c0_7] : memref<16x256xbf16, #tpu.memory_space<vmem>>, vector<16x128xbf16>
    tpu.vector_store %arg14[%c0_6, %c0_7], %13 {strides = array<i32>} : memref<16x256xbf16, #tpu.memory_space<vmem>>, vector<16x128xbf16>,
    %15 = vector.extract_strided_slice %12 {offsets = [16, 0], sizes = [16, 128], strides = [1, 1]} : vector<32x128xbf16> to vector<16x128xbf16>
    %c0_8 = arith.constant 0 : index
    %c128 = arith.constant 128 : index
    %16 = vector.load %arg14[%c0_8, %c128] : memref<16x256xbf16, #tpu.memory_space<vmem>>, vector<16x128xbf16>
    tpu.vector_store %arg14[%c0_8, %c128], %15 {strides = array<i32>} : memref<16x256xbf16, #tpu.memory_space<vmem>>, vector<16x128xbf16>,
    %c0_9 = arith.constant 0 : index
    %c0_10 = arith.constant 0 : index
    %17 = vector.load %arg8[%c0_9, %c0_10] : memref<8x16xbf16, #tpu.memory_space<vmem>>, vector<8x16xbf16>
    %c0_11 = arith.constant 0 : index
    %c0_12 = arith.constant 0 : index
    %18 = vector.load %arg14[%c0_11, %c0_12] : memref<16x256xbf16, #tpu.memory_space<vmem>>, vector<16x256xbf16>
    %cst_13 = arith.constant dense<0.000000e+00> : vector<8x256xf32>
    %19 = tpu.matmul %17, %18, %cst_13 {dimension_numbers = #tpu.dot_dimension_numbers<[1], [0], [0], [1], [0, 0, 1, 1], [], []>} : vector<8x16xbf16>, vector<16x256xbf16>, vector<8x256xf32> -> vector<8x256xf32>
    %c0_14 = arith.constant 0 : index
    %c0_15 = arith.constant 0 : index
    %20 = vector.load %arg9[%c0_14, %c0_15] : memref<8x1xf32, #tpu.memory_space<vmem>>, vector<8x1xf32>
    %21 = vector.broadcast %20 : vector<8x1xf32> to vector<8x256xf32>
    %22 = arith.addf %19, %21 : vector<8x256xf32>
    %c0_i32_16 = arith.constant 0 : i32
    %23 = arith.addi %c0_i32_16, %4 : i32
    %24 = vector.extract_strided_slice %22 {offsets = [0, 0], sizes = [8, 128], strides = [1, 1]} : vector<8x256xf32> to vector<8x128xf32>
    %c0_17 = arith.constant 0 : index
    %c0_18 = arith.constant 0 : index
    %25 = arith.index_cast %23 : i32 to index
    %26 = vector.load %arg2[%c0_17, %c0_18, %25] : memref<1x8x256xf32, #tpu.memory_space<vmem>>, vector<1x8x128xf32>
    %27 = vector.shape_cast %26 : vector<1x8x128xf32> to vector<8x128xf32>
    %28 = arith.addf %24, %27 : vector<8x128xf32>
    %c0_19 = arith.constant 0 : index
    %c0_20 = arith.constant 0 : index
    %29 = arith.index_cast %23 : i32 to index
    %30 = vector.load %arg10[%c0_19, %c0_20, %29] : memref<1x8x256xf32, #tpu.memory_space<vmem>>, vector<1x8x128xf32>
    %31 = vector.shape_cast %30 : vector<1x8x128xf32> to vector<8x128xf32>
    %32 = vector.shape_cast %28 : vector<8x128xf32> to vector<1x8x128xf32>
    tpu.vector_store %arg10[%c0_19, %c0_20, %29], %32 {strides = array<i32>} : memref<1x8x256xf32, #tpu.memory_space<vmem>>, vector<1x8x128xf32>,
    %c128_i32_21 = arith.constant 128 : i32
    %33 = arith.addi %c128_i32_21, %4 : i32
    %34 = vector.extract_strided_slice %22 {offsets = [0, 128], sizes = [8, 128], strides = [1, 1]} : vector<8x256xf32> to vector<8x128xf32>
    %c0_22 = arith.constant 0 : index
    %c0_23 = arith.constant 0 : index
    %35 = arith.index_cast %33 : i32 to index
    %36 = vector.load %arg2[%c0_22, %c0_23, %35] : memref<1x8x256xf32, #tpu.memory_space<vmem>>, vector<1x8x128xf32>
    %37 = vector.shape_cast %36 : vector<1x8x128xf32> to vector<8x128xf32>
    %38 = arith.addf %34, %37 : vector<8x128xf32>
    %c0_24 = arith.constant 0 : index
    %c0_25 = arith.constant 0 : index
    %39 = arith.index_cast %33 : i32 to index
    %40 = vector.load %arg10[%c0_24, %c0_25, %39] : memref<1x8x256xf32, #tpu.memory_space<vmem>>, vector<1x8x128xf32>
    %41 = vector.shape_cast %40 : vector<1x8x128xf32> to vector<8x128xf32>
    %42 = vector.shape_cast %38 : vector<8x128xf32> to vector<1x8x128xf32>
    tpu.vector_store %arg10[%c0_24, %c0_25, %39], %42 {strides = array<i32>} : memref<1x8x256xf32, #tpu.memory_space<vmem>>, vector<1x8x128xf32>,
    return
  }
  func.func @transform_0(%arg0: i32, %arg1: i32) -> (i32, i32, i32) {
    %c0_i32 = arith.constant 0 : i32
    %c0_i32_0 = arith.constant 0 : i32
    %c0_i32_1 = arith.constant 0 : i32
    return %arg0, %c0_i32, %c0_i32_0 : i32, i32, i32
  }
  func.func @transform_1(%arg0: i32, %arg1: i32) -> (i32, i32, i32) {
    %c0_i32 = arith.constant 0 : i32
    %c0_i32_0 = arith.constant 0 : i32
    %c0_i32_1 = arith.constant 0 : i32
    return %arg0, %c0_i32, %c0_i32_0 : i32, i32, i32
  }
  func.func @transform_2(%arg0: i32, %arg1: i32) -> (i32, i32) {
    %c0_i32 = arith.constant 0 : i32
    %c0_i32_0 = arith.constant 0 : i32
    %c0_i32_1 = arith.constant 0 : i32
    return %c0_i32, %c0_i32_0 : i32, i32
  }
  func.func @transform_3(%arg0: i32, %arg1: i32) -> (i32, i32) {
    %c0_i32 = arith.constant 0 : i32
    %c0_i32_0 = arith.constant 0 : i32
    %c0_i32_1 = arith.constant 0 : i32
    return %c0_i32, %c0_i32_0 : i32, i32
  }
  func.func @transform_4(%arg0: i32, %arg1: i32) -> (i32, i32) {
    %c0_i32 = arith.constant 0 : i32
    %c0_i32_0 = arith.constant 0 : i32
    %c0_i32_1 = arith.constant 0 : i32
    return %c0_i32, %c0_i32_0 : i32, i32
  }
  func.func @transform_5(%arg0: i32, %arg1: i32) -> (i32, i32) {
    %c0_i32 = arith.constant 0 : i32
    %c0_i32_0 = arith.constant 0 : i32
    %c0_i32_1 = arith.constant 0 : i32
    return %c0_i32, %c0_i32_0 : i32, i32
  }
  func.func @transform_6(%arg0: i32, %arg1: i32) -> (i32, i32) {
    %c0_i32 = arith.constant 0 : i32
    %c0_i32_0 = arith.constant 0 : i32
    %c0_i32_1 = arith.constant 0 : i32
    return %c0_i32, %c0_i32_0 : i32, i32
  }
  func.func @transform_7(%arg0: i32, %arg1: i32) -> (i32, i32) {
    %c0_i32 = arith.constant 0 : i32
    %c0_i32_0 = arith.constant 0 : i32
    %c0_i32_1 = arith.constant 0 : i32
    return %c0_i32, %c0_i32_0 : i32, i32
  }
  func.func @transform_8(%arg0: i32, %arg1: i32) -> (i32, i32, i32) {
    %c0_i32 = arith.constant 0 : i32
    %c0_i32_0 = arith.constant 0 : i32
    %c0_i32_1 = arith.constant 0 : i32
    return %arg0, %c0_i32, %c0_i32_0 : i32, i32, i32
  }
}

</mosaic_0001>

<llo_original>
// kernel: pnl_forward.1
$region0: #{pnl_forward.1}
  #allocation0 [shape = 'u32[]', space=smem, size = 0x4, offset = 0x4, fixed_abs, tag = 'smem constant byte address 0x4 - core index']
  #allocation1 [shape = 'u32[144,128]{1,0:T(1,128)}', space=vmem, size = 0x12000, scoped, tag = 'internal scratch']
  #allocation2 [shape = 'bf16[32,128]{1,0:T(16,128)(2,1)}', space=vmem, size = 0x2000, scoped, tag = 'scratch operand']
  #allocation3 [shape = 'bf16[32,32]{1,0:T(16,128)(2,1)}', space=vmem, size = 0x2000, scoped, tag = 'scratch operand']
  #allocation4 [shape = 'bf16[32,32]{1,0:T(16,128)(2,1)}', space=vmem, size = 0x2000, scoped, tag = 'scratch operand']
  #allocation5 [shape = 'bf16[16,256]{1,0:T(16,128)(2,1)}', space=vmem, size = 0x2000, scoped, tag = 'scratch operand']
  %s0 = inlined_call_operand.vmem [shape: f32[2,8,256], index: 0, kind: input, shape index: {}]
  %s1 = inlined_call_operand.vmem [shape: f32[2,8,64], index: 1, kind: input, shape index: {}]
  %s2 = inlined_call_operand.vmem [shape: bf16[16,8], index: 2, kind: input, shape index: {}]
  %s3 = inlined_call_operand.vmem [shape: f32[16,1], index: 3, kind: input, shape index: {}]
  %s4 = inlined_call_operand.vmem [shape: bf16[32,8], index: 4, kind: input, shape index: {}]
  %s5 = inlined_call_operand.vmem [shape: f32[32,1], index: 5, kind: input, shape index: {}]
  %s6 = inlined_call_operand.vmem [shape: bf16[8,16], index: 6, kind: input, shape index: {}]
  %s7 = inlined_call_operand.vmem [shape: f32[8,1], index: 7, kind: input, shape index: {}]
  %s8 = inlined_call_operand.vmem [shape: f32[2,8,256], index: 8, kind: output, shape index: {}]
  %s9 = sld [smem:[#allocation0]]
  $region69: #{pnl_forward.1} parent=0
    _
  %s11 = ssub.s32 1, %s9
  %s12 = scalar_select 0, %s11, %s9
  loop: start=0, step=1, limit=4
  $region2: #{pnl_forward.1} parent=0 // loop_pre_header
    _
  $region3: #{pnl_forward.1} parent=0 // loop_header
    %s14 = sphi 0, %s18
    %p15 = scmp.ge.s32.totalorder %s14, 4
    %s21 = sphi 0, %s33
    %s22 = sphi 0, %s29
    %s23 = sphi 0, %s21
    %s24 = sphi 0, %s22
    %s25 = sphi 0, %s23
    %s26 = sphi 0, %s24
    %s36 = sphi 0, %s38
    %s39 = sphi 0, %s36
    %s40 = sphi 0, %s39
    %s56 = sphi 0, %s40
    %s62 = sphi 0, %s64
    %s65 = sphi 0, %s62
    %s66 = sphi 0, %s65
    %s82 = sphi 0, %s66
    %s86 = sphi 0, %s86
    %s88 = sphi 0, %s86
    %s89 = sphi 0, %s88
    %s103 = sphi 0, %s89
    %s107 = sphi 0, %s107
    %s109 = sphi 0, %s107
    %s110 = sphi 0, %s109
    %s124 = sphi 0, %s110
    %s128 = sphi 0, %s128
    %s130 = sphi 0, %s128
    %s131 = sphi 0, %s130
    %s145 = sphi 0, %s131
    %s149 = sphi 0, %s149
    %s151 = sphi 0, %s149
    %s152 = sphi 0, %s151
    %s166 = sphi 0, %s152
    %s170 = sphi 0, %s170
    %s172 = sphi 0, %s170
    %s173 = sphi 0, %s172
    %s187 = sphi 0, %s173
    %s191 = sphi 0, %s191
    %s193 = sphi 0, %s191
    %s194 = sphi 0, %s193
    %s208 = sphi 0, %s194
    %s214 = sphi 0, %s216
    %s217 = sphi 0, %s214
    %s218 = sphi 0, %s217
    %s234 = sphi 0, %s218
  $region4: #{pnl_forward.1} parent=0 // loop_header_branch
    %17 = sbr.rel (%p15) target = $region8
  $region5: #{pnl_forward.1} parent=0 // loop_body
    %s19 = ssub.s32 %s14, 1
    %s20 = ssub.s32 %s14, 2
    %s27 = sadd.s32 1, %s22
    %p28 = scmp.ge.s32.totalorder %s27, 1
    %s29 = scalar_select %p28, 0, %s27
    %s30 = sadd.s32 1, %s21
    %s31 = scalar_select %p28, %s30, %s21
    %p32 = scmp.ge.s32.totalorder %s31, 2
    %s33 = scalar_select %p32, 0, %s31
    %s34 = ssub.s32 %s21, %s33
    %p35 = scmp.eq.s32.totalorder %s34, 0
    %s37 = sadd.s32 %s36, 1
    %s38 = scalar_select %p35, %s36, %s37
    %p41 = pneg %p35
    %p42 = scmp.eq.s32.totalorder %s14, 1
    %p43 = por %p41, %p42
    %p44 = scmp.ne.s32.totalorder %s36, %s39
    %p45 = scmp.eq.s32.totalorder %s14, 0
    %p46 = por %p44, %p45
    %p47 = scmp.ne.s32.totalorder %s36, %s39
    %p48 = scmp.eq.s32.totalorder %s19, 1
    %p49 = por %p47, %p48
    %p50 = scmp.ne.s32.totalorder %s39, %s40
    %p51 = scmp.eq.s32.totalorder %s19, 0
    %p52 = por %p50, %p51
    %p53 = scmp.ne.s32.totalorder %s39, %s40
    %p54 = scmp.eq.s32.totalorder %s20, 1
    %p55 = por %p53, %p54
    %p57 = scmp.ne.s32.totalorder %s40, %s56
    %p58 = scmp.eq.s32.totalorder %s20, 0
    %p59 = por %p57, %p58
    %s60 = ssub.s32 %s21, %s33
    %p61 = scmp.eq.s32.totalorder %s60, 0
    %s63 = sadd.s32 %s62, 1
    %s64 = scalar_select %p61, %s62, %s63
    %p67 = pneg %p61
    %p68 = scmp.eq.s32.totalorder %s14, 1
    %p69 = por %p67, %p68
    %p70 = scmp.ne.s32.totalorder %s62, %s65
    %p71 = scmp.eq.s32.totalorder %s14, 0
    %p72 = por %p70, %p71
    %p73 = scmp.ne.s32.totalorder %s62, %s65
    %p74 = scmp.eq.s32.totalorder %s19, 1
    %p75 = por %p73, %p74
    %p76 = scmp.ne.s32.totalorder %s65, %s66
    %p77 = scmp.eq.s32.totalorder %s19, 0
    %p78 = por %p76, %p77
    %p79 = scmp.ne.s32.totalorder %s65, %s66
    %p80 = scmp.eq.s32.totalorder %s20, 1
    %p81 = por %p79, %p80
    %p83 = scmp.ne.s32.totalorder %s66, %s82
    %p84 = scmp.eq.s32.totalorder %s20, 0
    %p85 = por %p83, %p84
    %s87 = sadd.s32 %s86, 1
    %p90 = scmp.eq.s32.totalorder %s14, 1
    %p91 = scmp.ne.s32.totalorder %s86, %s88
    %p92 = scmp.eq.s32.totalorder %s14, 0
    %p93 = por %p91, %p92
    %p94 = scmp.ne.s32.totalorder %s86, %s88
    %p95 = scmp.eq.s32.totalorder %s19, 1
    %p96 = por %p94, %p95
    %p97 = scmp.ne.s32.totalorder %s88, %s89
    %p98 = scmp.eq.s32.totalorder %s19, 0
    %p99 = por %p97, %p98
    %p100 = scmp.ne.s32.totalorder %s88, %s89
    %p101 = scmp.eq.s32.totalorder %s20, 1
    %p102 = por %p100, %p101
    %p104 = scmp.ne.s32.totalorder %s89, %s103
    %p105 = scmp.eq.s32.totalorder %s20, 0
    %p106 = por %p104, %p105
    %s108 = sadd.s32 %s107, 1
    %p111 = scmp.eq.s32.totalorder %s14, 1
    %p112 = scmp.ne.s32.totalorder %s107, %s109
    %p113 = scmp.eq.s32.totalorder %s14, 0
    %p114 = por %p112, %p113
    %p115 = scmp.ne.s32.totalorder %s107, %s109
    %p116 = scmp.eq.s32.totalorder %s19, 1
    %p117 = por %p115, %p116
    %p118 = scmp.ne.s32.totalorder %s109, %s110
    %p119 = scmp.eq.s32.totalorder %s19, 0
    %p120 = por %p118, %p119
    %p121 = scmp.ne.s32.totalorder %s109, %s110
    %p122 = scmp.eq.s32.totalorder %s20, 1
    %p123 = por %p121, %p122
    %p125 = scmp.ne.s32.totalorder %s110, %s124
    %p126 = scmp.eq.s32.totalorder %s20, 0
    %p127 = por %p125, %p126
    %s129 = sadd.s32 %s128, 1
    %p132 = scmp.eq.s32.totalorder %s14, 1
    %p133 = scmp.ne.s32.totalorder %s128, %s130
    %p134 = scmp.eq.s32.totalorder %s14, 0
    %p135 = por %p133, %p134
    %p136 = scmp.ne.s32.totalorder %s128, %s130
    %p137 = scmp.eq.s32.totalorder %s19, 1
    %p138 = por %p136, %p137
    %p139 = scmp.ne.s32.totalorder %s130, %s131
    %p140 = scmp.eq.s32.totalorder %s19, 0
    %p141 = por %p139, %p140
    %p142 = scmp.ne.s32.totalorder %s130, %s131
    %p143 = scmp.eq.s32.totalorder %s20, 1
    %p144 = por %p142, %p143
    %p146 = scmp.ne.s32.totalorder %s131, %s145
    %p147 = scmp.eq.s32.totalorder %s20, 0
    %p148 = por %p146, %p147
    %s150 = sadd.s32 %s149, 1
    %p153 = scmp.eq.s32.totalorder %s14, 1
    %p154 = scmp.ne.s32.totalorder %s149, %s151
    %p155 = scmp.eq.s32.totalorder %s14, 0
    %p156 = por %p154, %p155
    %p157 = scmp.ne.s32.totalorder %s149, %s151
    %p158 = scmp.eq.s32.totalorder %s19, 1
    %p159 = por %p157, %p158
    %p160 = scmp.ne.s32.totalorder %s151, %s152
    %p161 = scmp.eq.s32.totalorder %s19, 0
    %p162 = por %p160, %p161
    %p163 = scmp.ne.s32.totalorder %s151, %s152
    %p164 = scmp.eq.s32.totalorder %s20, 1
    %p165 = por %p163, %p164
    %p167 = scmp.ne.s32.totalorder %s152, %s166
    %p168 = scmp.eq.s32.totalorder %s20, 0
    %p169 = por %p167, %p168
    %s171 = sadd.s32 %s170, 1
    %p174 = scmp.eq.s32.totalorder %s14, 1
    %p175 = scmp.ne.s32.totalorder %s170, %s172
    %p176 = scmp.eq.s32.totalorder %s14, 0
    %p177 = por %p175, %p176
    %p178 = scmp.ne.s32.totalorder %s170, %s172
    %p179 = scmp.eq.s32.totalorder %s19, 1
    %p180 = por %p178, %p179
    %p181 = scmp.ne.s32.totalorder %s172, %s173
    %p182 = scmp.eq.s32.totalorder %s19, 0
    %p183 = por %p181, %p182
    %p184 = scmp.ne.s32.totalorder %s172, %s173
    %p185 = scmp.eq.s32.totalorder %s20, 1
    %p186 = por %p184, %p185
    %p188 = scmp.ne.s32.totalorder %s173, %s187
    %p189 = scmp.eq.s32.totalorder %s20, 0
    %p190 = por %p188, %p189
    %s192 = sadd.s32 %s191, 1
    %p195 = scmp.eq.s32.totalorder %s14, 1
    %p196 = scmp.ne.s32.totalorder %s191, %s193
    %p197 = scmp.eq.s32.totalorder %s14, 0
    %p198 = por %p196, %p197
    %p199 = scmp.ne.s32.totalorder %s191, %s193
    %p200 = scmp.eq.s32.totalorder %s19, 1
    %p201 = por %p199, %p200
    %p202 = scmp.ne.s32.totalorder %s193, %s194
    %p203 = scmp.eq.s32.totalorder %s19, 0
    %p204 = por %p202, %p203
    %p205 = scmp.ne.s32.totalorder %s193, %s194
    %p206 = scmp.eq.s32.totalorder %s20, 1
    %p207 = por %p205, %p206
    %p209 = scmp.ne.s32.totalorder %s194, %s208
    %p210 = scmp.eq.s32.totalorder %s20, 0
    %p211 = por %p209, %p210
    %s212 = ssub.s32 %s21, %s33
    %p213 = scmp.eq.s32.totalorder %s212, 0
    %s215 = sadd.s32 %s214, 1
    %s216 = scalar_select %p213, %s214, %s215
    %p219 = pneg %p213
    %p220 = scmp.eq.s32.totalorder %s14, 1
    %p221 = por %p219, %p220
    %p222 = scmp.ne.s32.totalorder %s214, %s217
    %p223 = scmp.eq.s32.totalorder %s14, 0
    %p224 = por %p222, %p223
    %p225 = scmp.ne.s32.totalorder %s214, %s217
    %p226 = scmp.eq.s32.totalorder %s19, 1
    %p227 = por %p225, %p226
    %p228 = scmp.ne.s32.totalorder %s217, %s218
    %p229 = scmp.eq.s32.totalorder %s19, 0
    %p230 = por %p228, %p229
    %p231 = scmp.ne.s32.totalorder %s217, %s218
    %p232 = scmp.eq.s32.totalorder %s20, 1
    %p233 = por %p231, %p232
    %p235 = scmp.ne.s32.totalorder %s218, %s234
    %p236 = scmp.eq.s32.totalorder %s20, 0
    %p237 = por %p235, %p236
    %p238 = scmp.le.s32.totalorder 1, %s14
    %p239 = scmp.lt.s32.totalorder %s14, 3
    %p240 = pnand %p238, %p239
    %p241 = pneg %p240
    // Predicated region
    $region9: #{pnl_forward.1} parent=5 // pred_check
      _
    $region10: #{pnl_forward.1} parent=5 // pred_check_branch
      %243 = sbr.rel (%p240) target = $region12
    $region11: #{pnl_forward.1} parent=5 // pred_region
      %s244 = ssub.s32 %s14, 1
      // Predicated region
      $region13: #{pnl_forward.1} parent=11 // pred_check
        %p245 = pneg %p99
      $region14: #{pnl_forward.1} parent=11 // pred_check_branch
        %247 = sbr.rel (%p245) target = $region16
      $region15: #{pnl_forward.1} parent=11 // pred_region
        _
      $region16: #{pnl_forward.1} parent=11 // pred_fallthru
        _
      // Predicated region
      $region17: #{pnl_forward.1} parent=11 // pred_check
        %p248 = pneg %p120
      $region18: #{pnl_forward.1} parent=11 // pred_check_branch
        %250 = sbr.rel (%p248) target = $region20
      $region19: #{pnl_forward.1} parent=11 // pred_region
        _
      $region20: #{pnl_forward.1} parent=11 // pred_fallthru
        _
      // Predicated region
      $region21: #{pnl_forward.1} parent=11 // pred_check
        %p251 = pneg %p141
      $region22: #{pnl_forward.1} parent=11 // pred_check_branch
        %253 = sbr.rel (%p251) target = $region24
      $region23: #{pnl_forward.1} parent=11 // pred_region
        _
      $region24: #{pnl_forward.1} parent=11 // pred_fallthru
        _
      // Predicated region
      $region25: #{pnl_forward.1} parent=11 // pred_check
        %p254 = pneg %p162
      $region26: #{pnl_forward.1} parent=11 // pred_check_branch
        %256 = sbr.rel (%p254) target = $region28
      $region27: #{pnl_forward.1} parent=11 // pred_region
        _
      $region28: #{pnl_forward.1} parent=11 // pred_fallthru
        _
      // Predicated region
      $region29: #{pnl_forward.1} parent=11 // pred_check
        %p257 = pneg %p183
      $region30: #{pnl_forward.1} parent=11 // pred_check_branch
        %259 = sbr.rel (%p257) target = $region32
      $region31: #{pnl_forward.1} parent=11 // pred_region
        _
      $region32: #{pnl_forward.1} parent=11 // pred_fallthru
        _
      // Predicated region
      $region33: #{pnl_forward.1} parent=11 // pred_check
        %p260 = pneg %p204
      $region34: #{pnl_forward.1} parent=11 // pred_check_branch
        %262 = sbr.rel (%p260) target = $region36
      $region35: #{pnl_forward.1} parent=11 // pred_region
        _
      $region36: #{pnl_forward.1} parent=11 // pred_fallthru
        _
    $region12: #{pnl_forward.1} parent=5 // pred_fallthru
      _
    %p263 = scmp.lt.s32.totalorder %s14, 2
    // Predicated region
    $region37: #{pnl_forward.1} parent=5 // pred_check
      %p264 = pneg %p263
    $region38: #{pnl_forward.1} parent=5 // pred_check_branch
      %266 = sbr.rel (%p264) target = $region40
    $region39: #{pnl_forward.1} parent=5 // pred_region
      // Predicated region
      $region41: #{pnl_forward.1} parent=39 // pred_check
        %p267 = pneg %p46
      $region42: #{pnl_forward.1} parent=39 // pred_check_branch
        %269 = sbr.rel (%p267) target = $region44
      $region43: #{pnl_forward.1} parent=39 // pred_region
        %p270 = scmp.lt.s32.totalorder %s21, 1
        %s271 = scalar_select %p270, %s21, 1
        %s272 = smul.addr %s271, 2
        %s273 = smul.addr %s272, 8
        %s274 = scalar_lea.vmem %s0, %s273
      $region44: #{pnl_forward.1} parent=39 // pred_fallthru
        _
      // Predicated region
      $region45: #{pnl_forward.1} parent=39 // pred_check
        %p275 = pneg %p72
      $region46: #{pnl_forward.1} parent=39 // pred_check_branch
        %277 = sbr.rel (%p275) target = $region48
      $region47: #{pnl_forward.1} parent=39 // pred_region
        %p278 = scmp.lt.s32.totalorder %s21, 1
        %s279 = scalar_select %p278, %s21, 1
        %s280 = smul.addr %s279, 8
        %s281 = scalar_lea.vmem %s1, %s280
      $region48: #{pnl_forward.1} parent=39 // pred_fallthru
        _
    $region40: #{pnl_forward.1} parent=5 // pred_fallthru
      _
    %p282 = scmp.le.s32.totalorder 1, %s14
    %p283 = scmp.lt.s32.totalorder %s14, 3
    %p284 = pnand %p282, %p283
    %p285 = pneg %p284
    // Predicated region
    $region49: #{pnl_forward.1} parent=5 // pred_check
      _
    $region50: #{pnl_forward.1} parent=5 // pred_check_branch
      %287 = sbr.rel (%p284) target = $region52
    $region51: #{pnl_forward.1} parent=5 // pred_region
      %s288 = ssub.s32 %s14, 1
      %p289 = scmp.lt.s32.totalorder %s23, 1
      %s290 = scalar_select %p289, %s23, 1
      %s291 = smul.addr %s290, 2
      %s292 = smul.addr %s291, 8
      %s293 = scalar_lea.vmem %s0, %s292
      %p294 = pneg %p52
      %p295 = pneg %p49
      %p296 = scmp.lt.s32.totalorder %s23, 1
      %s297 = scalar_select %p296, %s23, 1
      %s298 = smul.addr %s297, 8
      %s299 = scalar_lea.vmem %s1, %s298
      %p300 = pneg %p78
      %p301 = pneg %p75
      %p302 = pneg %p99
      %p303 = pneg %p96
      %p304 = pneg %p120
      %p305 = pneg %p117
      %p306 = pneg %p141
      %p307 = pneg %p138
      %p308 = pneg %p162
      %p309 = pneg %p159
      %p310 = pneg %p183
      %p311 = pneg %p180
      %p312 = pneg %p204
      %p313 = pneg %p201
      %p314 = pneg %p230
      %p315 = pneg %p227
      %p316 = scmp.lt.s32.totalorder %s23, 1
      %s317 = scalar_select %p316, %s23, 1
      %s318 = smul.addr %s317, 2
      %s319 = smul.addr %s318, 8
      %s320 = scalar_lea.vmem %s8, %s319
      %p321 = scmp.lt.s32.totalorder %s23, 1
      %s322 = scalar_select %p321, %s23, 1
      %s323 = smul.addr %s322, 2
      %s324 = smul.addr %s323, 8
      %s325 = scalar_lea.vmem %s0, %s324
      %p326 = scmp.lt.s32.totalorder %s23, 1
      %s327 = scalar_select %p326, %s23, 1
      %s328 = smul.addr %s327, 8
      %s329 = scalar_lea.vmem %s1, %s328
      %p330 = scmp.lt.s32.totalorder %s23, 1
      %s331 = scalar_select %p330, %s23, 1
      %s332 = smul.addr %s331, 2
      %s333 = smul.addr %s332, 8
      %s334 = scalar_lea.vmem %s8, %s333
      %p336 = scmp.eq.s32.totalorder %s24, 0
      // Predicated region
      $region53: #{pnl_forward.1} parent=51 // pred_check
        %p337 = pneg %p336
      $region54: #{pnl_forward.1} parent=51 // pred_check_branch
        %339 = sbr.rel (%p337) target = $region56
      $region55: #{pnl_forward.1} parent=51 // pred_region
        %v340 = vld [vmem:[%s329] sm:$0xff]
        %v341 = vpack.c.bf16 %v340, %v340
        %v342 = vld [vmem:[%s4] sm:$0xf]
        %v343 = vld [vmem:[%s4 + $0x4] sm:$0xf]
        %v344 = vld [vmem:[%s4 + $0x8] sm:$0xf]
        %v345 = vld [vmem:[%s4 + $0xc] sm:$0xf]
        %v346 = vld [vmem:[%s5] sm:$0xff]
        %v347 = vld [vmem:[%s5 + $0x8] sm:$0xff]
        %v348 = vld [vmem:[%s5 + $0x10] sm:$0xff]
        %v349 = vld [vmem:[%s5 + $0x18] sm:$0xff]
        %351 = vset.pattern.permute.xlu0 0
        %352 = vperm.xlu0 %351, %v346
        %v353 = vpop.permute.xlu0 %352
        %356 = vset.pattern.permute.xlu0 0
        %357 = vperm.xlu0 %356, %v347
        %v358 = vpop.permute.xlu0 %357
        %361 = vset.pattern.permute.xlu0 0
        %362 = vperm.xlu0 %361, %v348
        %v363 = vpop.permute.xlu0 %362
        %366 = vset.pattern.permute.xlu0 0
        %367 = vperm.xlu0 %366, %v349
        %v368 = vpop.permute.xlu0 %367
        %v374 = vunpack.c.l.b16 %v342
        %v375 = vunpack.c.l.b16 %v343
        %v376 = vunpack.c.l.b16 %v344
        %v377 = vunpack.c.l.b16 %v345
        %v378 = vpack.c.b16 %v375, %v374
        %v379 = vpack.c.b16 %v377, %v376
        %vm380 = vcmask 64512
        %v382 = vsel %vm380, %v378, 0
        %v385 = vsel %vm380, %v379, 0
        %vm387 = vcmask 1043456
        %v389 = vsel %vm387, %v341, 0
        %391 = vmatprep.subr.bf16.mxu0 0
        %392 = vmatpush1.bf16.msra.mxu0 %v389
        %393 = vmatprep.subr.bf16.mxu0 0
        %394 = vmatpush1.bf16.msra.mxu0 0
        %395 = vmatprep.subr.bf16.mxu0 0
        %396 = vmatpush1.bf16.msra.mxu0 0
        %397 = vmatprep.subr.bf16.mxu0 0
        %398 = vmatpush1.bf16.msra.mxu0 0
        %399 = vmatprep.subr.bf16.mxu0 0
        %400 = vmatpush1.bf16.msra.mxu0 0
        %401 = vmatprep.subr.bf16.mxu0 0
        %402 = vmatpush1.bf16.msra.mxu0 0
        %403 = vmatprep.subr.bf16.mxu0 0
        %404 = vmatpush1.bf16.msra.mxu0 0
        %405 = vmatprep.subr.bf16.mxu0 0
        %406 = vmatpush1.bf16.msra.mxu0 0
        %407 = vmatprep.subr.bf16.mxu0 0
        %408 = vmatpush1.bf16.msra.mxu0 0
        %409 = vmatprep.subr.bf16.mxu0 0
        %410 = vmatpush1.bf16.msra.mxu0 0
        %411 = vmatprep.subr.bf16.mxu0 0
        %412 = vmatpush1.bf16.msra.mxu0 0
        %413 = vmatprep.subr.bf16.mxu0 0
        %414 = vmatpush1.bf16.msra.mxu0 0
        %415 = vmatprep.subr.bf16.mxu0 0
        %416 = vmatpush1.bf16.msra.mxu0 0
        %417 = vmatprep.subr.bf16.mxu0 0
        %418 = vmatpush1.bf16.msra.mxu0 0
        %419 = vmatprep.subr.bf16.mxu0 0
        %420 = vmatpush1.bf16.msra.mxu0 0
        %421 = vmatprep.subr.bf16.mxu0 0
        %422 = vmatpush1.bf16.msra.mxu0 0
        %423 = vmatprep.mubr.bf16.mxu0 0
        %424 = vmatmul.mubr.bf16.gmra.mrb[0].mxu0 %v382
        %v425 = vpop.f32.mrb[0].mxu0
        %v426 = vadd.f32 %v353, %v425
        %v427 = vpop.f32.mrb[0].mxu0
        %v428 = vpop.f32.mrb[0].mxu0
        %v429 = vadd.f32 %v358, %v428
        %v430 = vpop.f32.mrb[0].mxu0
        %431 = vmatprep.mubr.bf16.mxu0 0
        %432 = vmatmul.mubr.bf16.gmra.mrb[0].mxu0 %v385
        %v433 = vpop.f32.mrb[0].mxu0
        %v434 = vadd.f32 %v363, %v433
        %v435 = vpop.f32.mrb[0].mxu0
        %v436 = vpop.f32.mrb[0].mxu0
        %v437 = vadd.f32 %v368, %v436
        %v438 = vpop.f32.mrb[0].mxu0
        %439 = vdwg.mxu0
        %v440 = vpack.c.bf16 %v429, %v426
        %v441 = vpack.c.bf16 %v437, %v434
        %v442 = vld [vmem:[%s325] sm:$0xff]
        %v443 = vld [vmem:[%s325 + $0x8] sm:$0xff]
        %v444 = vpack.c.bf16 %v442, %v442
        %v445 = vpack.c.bf16 %v443, %v443
        %v446 = vld [vmem:[%s2] sm:$0xf]
        %v447 = vld [vmem:[%s2 + $0x4] sm:$0xf]
        %v448 = vld [vmem:[%s3] sm:$0xff]
        %v449 = vld [vmem:[%s3 + $0x8] sm:$0xff]
        %451 = vset.pattern.permute.xlu0 0
        %452 = vperm.xlu0 %451, %v448
        %v453 = vpop.permute.xlu0 %452
        %456 = vset.pattern.permute.xlu0 0
        %457 = vperm.xlu0 %456, %v449
        %v458 = vpop.permute.xlu0 %457
        %v462 = vunpack.c.l.b16 %v446
        %v463 = vunpack.c.l.b16 %v447
        %v464 = vpack.c.b16 %v463, %v462
        %v466 = vsel %vm380, %v464, 0
        %v469 = vsel %vm387, %v444, 0
        %v472 = vsel %vm387, %v445, 0
        %474 = vmatprep.subr.bf16.mxu0 %v472
        %475 = vmatpush1.bf16.msra.mxu0 %v469
        %476 = vmatprep.subr.bf16.mxu0 0
        %477 = vmatpush1.bf16.msra.mxu0 0
        %478 = vmatprep.subr.bf16.mxu0 0
        %479 = vmatpush1.bf16.msra.mxu0 0
        %480 = vmatprep.subr.bf16.mxu0 0
        %481 = vmatpush1.bf16.msra.mxu0 0
        %482 = vmatprep.subr.bf16.mxu0 0
        %483 = vmatpush1.bf16.msra.mxu0 0
        %484 = vmatprep.subr.bf16.mxu0 0
        %485 = vmatpush1.bf16.msra.mxu0 0
        %486 = vmatprep.subr.bf16.mxu0 0
        %487 = vmatpush1.bf16.msra.mxu0 0
        %488 = vmatprep.subr.bf16.mxu0 0
        %489 = vmatpush1.bf16.msra.mxu0 0
        %490 = vmatprep.subr.bf16.mxu0 0
        %491 = vmatpush1.bf16.msra.mxu0 0
        %492 = vmatprep.subr.bf16.mxu0 0
        %493 = vmatpush1.bf16.msra.mxu0 0
        %494 = vmatprep.subr.bf16.mxu0 0
        %495 = vmatpush1.bf16.msra.mxu0 0
        %496 = vmatprep.subr.bf16.mxu0 0
        %497 = vmatpush1.bf16.msra.mxu0 0
        %498 = vmatprep.subr.bf16.mxu0 0
        %499 = vmatpush1.bf16.msra.mxu0 0
        %500 = vmatprep.subr.bf16.mxu0 0
        %501 = vmatpush1.bf16.msra.mxu0 0
        %502 = vmatprep.subr.bf16.mxu0 0
        %503 = vmatpush1.bf16.msra.mxu0 0
        %504 = vmatprep.subr.bf16.mxu0 0
        %505 = vmatpush1.bf16.msra.mxu0 0
        %506 = vmatprep.mubr.bf16.mxu0 0
        %507 = vmatmul.mubr.bf16.gmra.mrb[0].mxu0 %v466
        %v508 = vpop.f32.mrb[0].mxu0
        %v509 = vadd.f32 %v453, %v508
        %v510 = vpop.f32.mrb[0].mxu0
        %v511 = vadd.f32 %v453, %v510
        %v512 = vpop.f32.mrb[0].mxu0
        %v513 = vadd.f32 %v458, %v512
        %v514 = vpop.f32.mrb[0].mxu0
        %v515 = vadd.f32 %v458, %v514
        %516 = vdwg.mxu0
        %v517 = vpack.c.bf16 %v513, %v509
        %v518 = vpack.c.bf16 %v515, %v511
        %vm519 = vcmask 261120
        %520 = vst.msk [vmem:[#allocation3] sm:$0xff] %vm519, %v440
        %521 = vst.msk [vmem:[#allocation4] sm:$0xff] %vm519, %v441
        %522 = vst [vmem:[#allocation2] sm:$0xff] %v517
        %524 = vrot.lane.b32.xlu0 %v440, 96
        %v525 = vpop.permute.xlu0 %524
        %527 = vst.msk [vmem:[#allocation3 + $0x8] sm:$0xff] %vm519, %v525
        %529 = vrot.lane.b32.xlu0 %v441, 96
        %v530 = vpop.permute.xlu0 %529
        %532 = vst.msk [vmem:[#allocation4 + $0x8] sm:$0xff] %vm519, %v530
        %533 = vst [vmem:[#allocation2 + $0x8] sm:$0xff] %v518
      $region56: #{pnl_forward.1} parent=51 // pred_fallthru
        _
      %s534 = smul.u32 %s24, 128
      %s535 = sshra.s32 %s534, 7
      %s536 = sand.u32 %s534, 127
      %s537 = smul.addr %s535, 8
      %s538 = scalar_lea.vmem [#allocation2], %s537
      %v539 = vld [vmem:[%s538] sm:$0xff]
      %v540 = vld [vmem:[%s538 + $0x8] sm:$0xff]
      %v541 = vld [vmem:[#allocation4] sm:$0xff]
      %v542 = vld [vmem:[#allocation4 + $0x8] sm:$0xff]
      %543 = vxpose.xlu0.c.b16.start [1/8] %v539, 128
      %544 = vxpose.xlu0.c.b16.cont [2/8] %v540, 128
      %545 = vxpose.xlu0.c.b16.cont [3/8] 0, 128
      %546 = vxpose.xlu0.c.b16.cont [4/8] 0, 128
      %547 = vxpose.xlu0.c.b16.cont [5/8] 0, 128
      %548 = vxpose.xlu0.c.b16.cont [6/8] 0, 128
      %549 = vxpose.xlu0.c.b16.cont [7/8] 0, 128
      %550 = vxpose.xlu0.c.b16.end [8/8] 0, 128
      %v551 = vpop.trf.xlu0
      %v552 = vpop.trf.xlu0
      %v553 = vpop.trf.xlu0
      %v554 = vpop.trf.xlu0
      %v555 = vpop.trf.xlu0
      %v556 = vpop.trf.xlu0
      %v557 = vpop.trf.xlu0
      %v558 = vpop.trf.xlu0
      %vm559 = vcmask 261120
      %v561 = vsel %vm559, %v551, 0
      %v564 = vsel %vm559, %v552, 0
      %v567 = vsel %vm559, %v553, 0
      %v570 = vsel %vm559, %v554, 0
      %v573 = vsel %vm559, %v555, 0
      %v576 = vsel %vm559, %v556, 0
      %v579 = vsel %vm559, %v557, 0
      %v582 = vsel %vm559, %v558, 0
      %584 = vmatprep.subr.bf16.mxu0 0
      %585 = vmatpush1.bf16.msra.mxu0 %v541
      %586 = vmatprep.subr.bf16.mxu0 0
      %587 = vmatpush1.bf16.msra.mxu0 %v542
      %588 = vmatprep.subr.bf16.mxu0 0
      %589 = vmatpush1.bf16.msra.mxu0 0
      %590 = vmatprep.subr.bf16.mxu0 0
      %591 = vmatpush1.bf16.msra.mxu0 0
      %592 = vmatprep.subr.bf16.mxu0 0
      %593 = vmatpush1.bf16.msra.mxu0 0
      %594 = vmatprep.subr.bf16.mxu0 0
      %595 = vmatpush1.bf16.msra.mxu0 0
      %596 = vmatprep.subr.bf16.mxu0 0
      %597 = vmatpush1.bf16.msra.mxu0 0
      %598 = vmatprep.subr.bf16.mxu0 0
      %599 = vmatpush1.bf16.msra.mxu0 0
      %600 = vmatprep.subr.bf16.mxu0 0
      %601 = vmatpush1.bf16.msra.mxu0 0
      %602 = vmatprep.subr.bf16.mxu0 0
      %603 = vmatpush1.bf16.msra.mxu0 0
      %604 = vmatprep.subr.bf16.mxu0 0
      %605 = vmatpush1.bf16.msra.mxu0 0
      %606 = vmatprep.subr.bf16.mxu0 0
      %607 = vmatpush1.bf16.msra.mxu0 0
      %608 = vmatprep.subr.bf16.mxu0 0
      %609 = vmatpush1.bf16.msra.mxu0 0
      %610 = vmatprep.subr.bf16.mxu0 0
      %611 = vmatpush1.bf16.msra.mxu0 0
      %612 = vmatprep.subr.bf16.mxu0 0
      %613 = vmatpush1.bf16.msra.mxu0 0
      %614 = vmatprep.subr.bf16.mxu0 0
      %615 = vmatpush1.bf16.msra.mxu0 0
      %616 = vmatprep.mubr.bf16.mxu0 0
      %617 = vmatmul.mubr.bf16.gmra.mrb[0].mxu0 %v561
      %v618 = vpop.f32.mrb[0].mxu0
      %v619 = vadd.f32 0.0, %v618
      %v620 = vpop.f32.mrb[0].mxu0
      %v621 = vpop.f32.mrb[0].mxu0
      %v622 = vadd.f32 0.0, %v621
      %v623 = vpop.f32.mrb[0].mxu0
      %624 = vmatprep.mubr.bf16.mxu0 0
      %625 = vmatmul.mubr.bf16.gmra.mrb[0].mxu0 %v564
      %v626 = vpop.f32.mrb[0].mxu0
      %v627 = vadd.f32 0.0, %v626
      %v628 = vpop.f32.mrb[0].mxu0
      %v629 = vpop.f32.mrb[0].mxu0
      %v630 = vadd.f32 0.0, %v629
      %v631 = vpop.f32.mrb[0].mxu0
      %632 = vmatprep.mubr.bf16.mxu0 0
      %633 = vmatmul.mubr.bf16.gmra.mrb[0].mxu0 %v567
      %v634 = vpop.f32.mrb[0].mxu0
      %v635 = vadd.f32 0.0, %v634
      %v636 = vpop.f32.mrb[0].mxu0
      %v637 = vpop.f32.mrb[0].mxu0
      %v638 = vadd.f32 0.0, %v637
      %v639 = vpop.f32.mrb[0].mxu0
      %640 = vmatprep.mubr.bf16.mxu0 0
      %641 = vmatmul.mubr.bf16.gmra.mrb[0].mxu0 %v570
      %v642 = vpop.f32.mrb[0].mxu0
      %v643 = vadd.f32 0.0, %v642
      %v644 = vpop.f32.mrb[0].mxu0
      %v645 = vpop.f32.mrb[0].mxu0
      %v646 = vadd.f32 0.0, %v645
      %v647 = vpop.f32.mrb[0].mxu0
      %648 = vmatprep.mubr.bf16.mxu0 0
      %649 = vmatmul.mubr.bf16.gmra.mrb[0].mxu0 %v573
      %v650 = vpop.f32.mrb[0].mxu0
      %v651 = vadd.f32 0.0, %v650
      %v652 = vpop.f32.mrb[0].mxu0
      %v653 = vpop.f32.mrb[0].mxu0
      %v654 = vadd.f32 0.0, %v653
      %v655 = vpop.f32.mrb[0].mxu0
      %656 = vmatprep.mubr.bf16.mxu0 0
      %657 = vmatmul.mubr.bf16.gmra.mrb[0].mxu0 %v576
      %v658 = vpop.f32.mrb[0].mxu0
      %v659 = vadd.f32 0.0, %v658
      %v660 = vpop.f32.mrb[0].mxu0
      %v661 = vpop.f32.mrb[0].mxu0
      %v662 = vadd.f32 0.0, %v661
      %v663 = vpop.f32.mrb[0].mxu0
      %664 = vmatprep.mubr.bf16.mxu0 0
      %665 = vmatmul.mubr.bf16.gmra.mrb[0].mxu0 %v579
      %v666 = vpop.f32.mrb[0].mxu0
      %v667 = vadd.f32 0.0, %v666
      %v668 = vpop.f32.mrb[0].mxu0
      %v669 = vpop.f32.mrb[0].mxu0
      %v670 = vadd.f32 0.0, %v669
      %v671 = vpop.f32.mrb[0].mxu0
      %672 = vmatprep.mubr.bf16.mxu0 0
      %673 = vmatmul.mubr.bf16.gmra.mrb[0].mxu0 %v582
      %v674 = vpop.f32.mrb[0].mxu0
      %v675 = vadd.f32 0.0, %v674
      %v676 = vpop.f32.mrb[0].mxu0
      %v677 = vpop.f32.mrb[0].mxu0
      %v678 = vadd.f32 0.0, %v677
      %v679 = vpop.f32.mrb[0].mxu0
      %680 = vdwg.mxu0
      %v681 = vld [vmem:[#allocation3] sm:$0xff]
      %v682 = vld [vmem:[#allocation3 + $0x8] sm:$0xff]
      %v683 = vpack.c.bf16 %v622, %v619
      %v684 = vpack.c.bf16 %v630, %v627
      %v685 = vpack.c.bf16 %v638, %v635
      %v686 = vpack.c.bf16 %v646, %v643
      %v687 = vpack.c.bf16 %v654, %v651
      %v688 = vpack.c.bf16 %v662, %v659
      %v689 = vpack.c.bf16 %v670, %v667
      %v690 = vpack.c.bf16 %v678, %v675
      %v692 = vsel %vm559, %v681, 0
      %v695 = vsel %vm559, %v682, 0
      %v698 = vsel %vm559, %v683, 0
      %v701 = vsel %vm559, %v684, 0
      %v704 = vsel %vm559, %v685, 0
      %v707 = vsel %vm559, %v686, 0
      %v710 = vsel %vm559, %v687, 0
      %v713 = vsel %vm559, %v688, 0
      %v716 = vsel %vm559, %v689, 0
      %v719 = vsel %vm559, %v690, 0
      %721 = vmatprep.subr.bf16.mxu0 0
      %722 = vmatpush1.bf16.xpose.msra.mxu0 %v698
      %723 = vmatprep.subr.bf16.mxu0 0
      %724 = vmatpush1.bf16.xpose.msra.mxu0 %v701
      %725 = vmatprep.subr.bf16.mxu0 0
      %726 = vmatpush1.bf16.xpose.msra.mxu0 %v704
      %727 = vmatprep.subr.bf16.mxu0 0
      %728 = vmatpush1.bf16.xpose.msra.mxu0 %v707
      %729 = vmatprep.subr.bf16.mxu0 0
      %730 = vmatpush1.bf16.xpose.msra.mxu0 %v710
      %731 = vmatprep.subr.bf16.mxu0 0
      %732 = vmatpush1.bf16.xpose.msra.mxu0 %v713
      %733 = vmatprep.subr.bf16.mxu0 0
      %734 = vmatpush1.bf16.xpose.msra.mxu0 %v716
      %735 = vmatprep.subr.bf16.mxu0 0
      %736 = vmatpush1.bf16.xpose.msra.mxu0 %v719
      %737 = vmatprep.subr.bf16.mxu0 0
      %738 = vmatpush1.bf16.xpose.msra.mxu0 0
      %739 = vmatprep.subr.bf16.mxu0 0
      %740 = vmatpush1.bf16.xpose.msra.mxu0 0
      %741 = vmatprep.subr.bf16.mxu0 0
      %742 = vmatpush1.bf16.xpose.msra.mxu0 0
      %743 = vmatprep.subr.bf16.mxu0 0
      %744 = vmatpush1.bf16.xpose.msra.mxu0 0
      %745 = vmatprep.subr.bf16.mxu0 0
      %746 = vmatpush1.bf16.xpose.msra.mxu0 0
      %747 = vmatprep.subr.bf16.mxu0 0
      %748 = vmatpush1.bf16.xpose.msra.mxu0 0
      %749 = vmatprep.subr.bf16.mxu0 0
      %750 = vmatpush1.bf16.xpose.msra.mxu0 0
      %751 = vmatprep.subr.bf16.mxu0 0
      %752 = vmatpush1.bf16.xpose.msra.mxu0 0
      %753 = vmatprep.mubr.bf16.mxu0 0
      %754 = vmatmul.mubr.bf16.gmra.mrb[0].mxu0 %v692
      %v755 = vpop.f32.mrb[0].mxu0
      %v756 = vadd.f32 0.0, %v755
      %v757 = vpop.f32.mrb[0].mxu0
      %v758 = vpop.f32.mrb[0].mxu0
      %v759 = vadd.f32 0.0, %v758
      %v760 = vpop.f32.mrb[0].mxu0
      %761 = vmatprep.mubr.bf16.mxu0 0
      %762 = vmatmul.mubr.bf16.gmra.mrb[0].mxu0 %v695
      %v763 = vpop.f32.mrb[0].mxu0
      %v764 = vadd.f32 0.0, %v763
      %v765 = vpop.f32.mrb[0].mxu0
      %v766 = vpop.f32.mrb[0].mxu0
      %v767 = vadd.f32 0.0, %v766
      %v768 = vpop.f32.mrb[0].mxu0
      %769 = vdwg.mxu0
      %v770 = vpack.c.bf16 %v759, %v756
      %v771 = vpack.c.bf16 %v767, %v764
      %772 = vst [vmem:[#allocation5] sm:$0xff] %v770
      %773 = vst [vmem:[#allocation5 + $0x8] sm:$0xff] %v771
      %v774 = vld [vmem:[%s6] sm:$0xf]
      %v775 = vld [vmem:[#allocation5] sm:$0xff]
      %v776 = vld [vmem:[#allocation5 + $0x8] sm:$0xff]
      %v777 = vld [vmem:[%s7] sm:$0xff]
      %779 = vset.pattern.permute.xlu0 0
      %780 = vperm.xlu0 %779, %v777
      %v781 = vpop.permute.xlu0 %780
      %vm783 = vcmask 130048
      %v785 = vsel %vm783, %v774, 0
      %787 = vmatprep.subr.bf16.mxu0 %v776
      %788 = vmatpush1.bf16.msra.mxu0 %v775
      %789 = vmatprep.subr.bf16.mxu0 0
      %790 = vmatpush1.bf16.msra.mxu0 0
      %791 = vmatprep.subr.bf16.mxu0 0
      %792 = vmatpush1.bf16.msra.mxu0 0
      %793 = vmatprep.subr.bf16.mxu0 0
      %794 = vmatpush1.bf16.msra.mxu0 0
      %795 = vmatprep.subr.bf16.mxu0 0
      %796 = vmatpush1.bf16.msra.mxu0 0
      %797 = vmatprep.subr.bf16.mxu0 0
      %798 = vmatpush1.bf16.msra.mxu0 0
      %799 = vmatprep.subr.bf16.mxu0 0
      %800 = vmatpush1.bf16.msra.mxu0 0
      %801 = vmatprep.subr.bf16.mxu0 0
      %802 = vmatpush1.bf16.msra.mxu0 0
      %803 = vmatprep.subr.bf16.mxu0 0
      %804 = vmatpush1.bf16.msra.mxu0 0
      %805 = vmatprep.subr.bf16.mxu0 0
      %806 = vmatpush1.bf16.msra.mxu0 0
      %807 = vmatprep.subr.bf16.mxu0 0
      %808 = vmatpush1.bf16.msra.mxu0 0
      %809 = vmatprep.subr.bf16.mxu0 0
      %810 = vmatpush1.bf16.msra.mxu0 0
      %811 = vmatprep.subr.bf16.mxu0 0
      %812 = vmatpush1.bf16.msra.mxu0 0
      %813 = vmatprep.subr.bf16.mxu0 0
      %814 = vmatpush1.bf16.msra.mxu0 0
      %815 = vmatprep.subr.bf16.mxu0 0
      %816 = vmatpush1.bf16.msra.mxu0 0
      %817 = vmatprep.subr.bf16.mxu0 0
      %818 = vmatpush1.bf16.msra.mxu0 0
      %819 = vmatprep.mubr.bf16.mxu0 0
      %820 = vmatmul.mubr.bf16.gmra.mrb[0].mxu0 %v785
      %v821 = vpop.f32.mrb[0].mxu0
      %v822 = vadd.f32 %v781, %v821
      %v823 = vpop.f32.mrb[0].mxu0
      %v824 = vadd.f32 %v781, %v823
      %v825 = vpop.f32.mrb[0].mxu0
      %v826 = vpop.f32.mrb[0].mxu0
      %827 = vdwg.mxu0
      %s828 = smul.addr %s535, 8
      %s829 = scalar_lea.vmem %s325, %s828
      %v830 = vld [vmem:[%s829] sm:$0xff]
      %v831 = vadd.f32 %v822, %v830
      %s832 = smul.addr %s535, 8
      %s833 = scalar_lea.vmem %s334, %s832
      %834 = vst [vmem:[%s833] sm:$0xff] %v831
      %s835 = sadd.s32 %s534, 128
      %s836 = sshra.s32 %s835, 7
      %s837 = sand.u32 %s835, 127
      %s838 = smul.addr %s836, 8
      %s839 = scalar_lea.vmem %s325, %s838
      %v840 = vld [vmem:[%s839] sm:$0xff]
      %v841 = vadd.f32 %v824, %v840
      %s842 = smul.addr %s836, 8
      %s843 = scalar_lea.vmem %s334, %s842
      %844 = vst [vmem:[%s843] sm:$0xff] %v841
      %p845 = scmp.lt.s32.totalorder %s23, 1
      %s846 = scalar_select %p845, %s23, 1
      %s847 = smul.addr %s846, 2
      %s848 = smul.addr %s847, 8
      %s849 = scalar_lea.vmem %s8, %s848
      // Predicated region
      $region57: #{pnl_forward.1} parent=51 // pred_check
        %p850 = pneg %p227
      $region58: #{pnl_forward.1} parent=51 // pred_check_branch
        %852 = sbr.rel (%p850) target = $region60
      $region59: #{pnl_forward.1} parent=51 // pred_region
        _
      $region60: #{pnl_forward.1} parent=51 // pred_fallthru
        _
    $region52: #{pnl_forward.1} parent=5 // pred_fallthru
      _
    %p853 = scmp.le.s32.totalorder 2, %s14
    // Predicated region
    $region61: #{pnl_forward.1} parent=5 // pred_check
      %p854 = pneg %p853
    $region62: #{pnl_forward.1} parent=5 // pred_check_branch
      %856 = sbr.rel (%p854) target = $region64
    $region63: #{pnl_forward.1} parent=5 // pred_region
      %s857 = ssub.s32 %s14, 2
      // Predicated region
      $region65: #{pnl_forward.1} parent=63 // pred_check
        %p858 = pneg %p233
      $region66: #{pnl_forward.1} parent=63 // pred_check_branch
        %860 = sbr.rel (%p858) target = $region68
      $region67: #{pnl_forward.1} parent=63 // pred_region
        %p861 = scmp.lt.s32.totalorder %s25, 1
        %s862 = scalar_select %p861, %s25, 1
        %s863 = smul.addr %s862, 2
        %s864 = smul.addr %s863, 8
        %s865 = scalar_lea.vmem %s8, %s864
      $region68: #{pnl_forward.1} parent=63 // pred_fallthru
        _
    $region64: #{pnl_forward.1} parent=5 // pred_fallthru
      _
  $region6: #{pnl_forward.1} parent=0 // loop_footer
    %s18 = sadd.s32 1, %s14
  $region7: #{pnl_forward.1} parent=0 // loop_footer_branch
    %13 = sbr.rel target = $region3
  $region8: #{pnl_forward.1} parent=0 // loop_exit
    _

</llo_original>
